<compile_context>
chip_gen: v6e
topology: v6e:2x2x1
jax: 0.10.0
libtpu: 0.0.40
codegen_flags: <defaults>
</compile_context>

<pallas_src>
import functools

import jax
import jax.numpy as jnp
from jax.experimental import pallas as pl
from jax.experimental.pallas import tpu as pltpu


def _as_int_exponent(p):
    try:
        pf = float(p)
    except TypeError:
        return None
    return int(pf) if pf == int(pf) else None


def _pow(v, p):
    """Power that stays on the VPU for integer exponents (incl. float 2.0)."""
    pi = _as_int_exponent(p)
    if pi is None:
        return v ** p          # non-integer exponent -> EUP exp/log path
    if pi == 1:
        return v
    if pi == 2:
        return v * v           # keep on the VPU; EUP already carries sigmoid
    return v ** pi             # lax.integer_pow -> repeated multiplies


def _focal_dice_kernel(x_ref, t_ref, np_ref, dp_ref, nn_ref, dn_ref,
                       *, p_pos, p_neg, clip_pos, clip_neg, binary_targets):
    k = pl.program_id(1)

    @pl.when(k == 0)
    def _init():
        np_ref[...] = jnp.zeros_like(np_ref)
        dp_ref[...] = jnp.zeros_like(dp_ref)
        nn_ref[...] = jnp.zeros_like(nn_ref)
        dn_ref[...] = jnp.zeros_like(dn_ref)

    x = x_ref[...].astype(jnp.float32)
    t = t_ref[...].astype(jnp.float32)

    pred = jax.nn.sigmoid(x)

    # positive branch
    p_pos_v = pred
    if clip_pos is not None and clip_pos >= 0:
        p_pos_v = jnp.minimum(pred + clip_pos, 1.0) * pred

    # negative branch
    one_m_t = 1.0 - t
    xs_neg = 1.0 - pred
    p_neg_v = xs_neg
    if clip_neg is not None and clip_neg >= 0:
        p_neg_v = jnp.minimum(xs_neg + clip_neg, 1.0) * xs_neg

    if binary_targets:
        # t**p == t and (1-t)**p == 1-t exactly for {0,1} targets.
        t_pow = t
        omt_pow = one_m_t
    else:
        t_pow = _pow(t, p_pos)
        omt_pow = _pow(one_m_t, p_neg)

    def rsum(v):
        # Cross-lane reduce (XLU-assisted); result (rows, 1).
        return jnp.sum(v, axis=-1, keepdims=True)

    np_ref[...] += rsum(p_pos_v * t)
    dp_ref[...] += rsum(_pow(p_pos_v, p_pos) + t_pow)
    nn_ref[...] += rsum(p_neg_v * one_m_t)
    dn_ref[...] += rsum(_pow(p_neg_v, p_neg) + omt_pow)


def focal_dice_loss(logits, target, *, p_pos=2, p_neg=2, clip_pos=0.7,
                    clip_neg=0.5, pos_weight=0.3, reduction='mean',
                    binary_targets=False):
    """Multi-label focal-dice loss (Pallas TPU).

    Caller contract: inputs may be bf16 (recommended on HBM-bound v5e); the
    kernel upcasts to f32 on-chip. Flattened feature dim must be a multiple
    of 128.
    """
    assert logits.shape[0] == target.shape[0], \
        "predict & target batch size don't match"
    B = logits.shape[0]

    x = logits.reshape(B, -1)
    t = target.reshape(B, -1)
    N = x.shape[1]

    # TODO(synk): feature dims that are not a multiple of 128 would need a
    # masked tail tile; not required for the shapes this module is used with.
    assert N % 128 == 0, "flattened feature dim must be a multiple of 128"

    # Sublane occupancy: split each sample into S sub-rows so the sublane dim
    # (rows = B*S) is a multiple of 8 even for tiny batches.
    S = 1
    if B % 8 != 0:
        for cand in (8, 4, 2):
            if (B * cand) % 8 == 0 and N % (cand * 128) == 0:
                S = cand
                break
    rows = B * S
    cols = N // S
    x = x.reshape(rows, cols)
    t = t.reshape(rows, cols)

    x_bytes = jnp.dtype(x.dtype).itemsize
    t_bytes = jnp.dtype(t.dtype).itemsize

    # ---- Per-chip VMEM budget (inputs + in-kernel f32 temporaries + outputs).
    try:
        vmem_cap = int(pltpu.get_tpu_info().vmem_capacity_bytes)
    except Exception:
        vmem_cap = 64 * 1024 * 1024          # conservative (v7x-sized) fallback
    budget = int(vmem_cap * 0.55)            # live-bytes budget for tiling
    vmem_limit = min(int(vmem_cap * 0.80), vmem_cap - 4 * 1024 * 1024)

    NUM_F32_TEMPS = 9                        # x,t upcasts, pred, branches, products

    def live_bytes(rb, tile):
        in_b = 2 * rb * tile * (x_bytes + t_bytes)   # double-buffered inputs
        tmp_b = NUM_F32_TEMPS * rb * tile * 4        # f32 temporaries
        out_b = 4 * 2 * rb * 4                       # four (rb,1) f32 accumulators
        return in_b + tmp_b + out_b

    # ---- Row block: split rows so both v7x TensorCores get work; if VMEM is
    # tight shrink the row block first so the feature tile stays wide.
    rb = rows
    if rows % 16 == 0:
        rb = rows // 2
    min_tile = min(cols, 512)
    while rb % 16 == 0 and live_bytes(rb, min_tile) > budget:
        rb //= 2

    # ---- Feature tile: largest multiple of 128 dividing cols that fits.
    if live_bytes(rb, cols) <= budget:
        tile_n = cols
    else:
        tile_n = 128
        cand = 256
        while cand <= cols:
            if cols % cand == 0 and live_bytes(rb, cand) <= budget:
                tile_n = cand
            cand += 128

    r_blocks = rows // rb
    k_steps = cols // tile_n

    kernel = functools.partial(
        _focal_dice_kernel,
        p_pos=p_pos, p_neg=p_neg, clip_pos=clip_pos, clip_neg=clip_neg,
        binary_targets=binary_targets)

    acc_shape = jax.ShapeDtypeStruct((rows, 1), jnp.float32)
    acc_spec = pl.BlockSpec((rb, 1), lambda r, k: (r, 0))
    # TODO(synk): on v5e, pipeline_mode=pl.Buffered(3) on the inputs may help
    # if the profile shows exposed DMA.
    in_spec = pl.BlockSpec((rb, tile_n), lambda r, k: (r, k))

    cost = pl.CostEstimate(
        flops=22 * rows * cols,
        transcendentals=rows * cols,
        bytes_accessed=rows * cols * (x_bytes + t_bytes) + 4 * rows * 4)

    np_acc, dp_acc, nn_acc, dn_acc = pl.pallas_call(
        kernel,
        out_shape=(acc_shape, acc_shape, acc_shape, acc_shape),
        grid_spec=pltpu.PrefetchScalarGridSpec(
            num_scalar_prefetch=0,
            grid=(r_blocks, k_steps),            # reduction axis last
            in_specs=[in_spec, in_spec],
            out_specs=[acc_spec, acc_spec, acc_spec, acc_spec],
        ),
        compiler_params=pltpu.CompilerParams(
            dimension_semantics=("parallel", "arbitrary"),
            vmem_limit_bytes=vmem_limit,
        ),
        cost_estimate=cost,
    )(x, t)

    def _per_sample(acc):
        # (B*S, 1) -> (B,): sum the S sub-rows of each sample.
        return acc.reshape(B, S).sum(axis=1)

    num_pos = _per_sample(np_acc)
    den_pos = _per_sample(dp_acc)
    num_neg = _per_sample(nn_acc)
    den_neg = _per_sample(dn_acc)

    loss_pos = 1.0 - 2.0 * num_pos / den_pos
    loss_neg = 1.0 - 2.0 * num_neg / den_neg
    loss = loss_pos * pos_weight + loss_neg * (1.0 - pos_weight)

    if reduction == 'mean':
        return jnp.mean(loss)
    elif reduction == 'sum':
        return jnp.sum(loss)
    elif reduction == 'none':
        return loss
    else:
        raise Exception('Unexpected reduction {}'.format(reduction))


def _reference(logits, target, *, p_pos=2, p_neg=2, clip_pos=0.7,
               clip_neg=0.5, pos_weight=0.3):
    B = logits.shape[0]
    pred = jax.nn.sigmoid(logits.reshape(B, -1).astype(jnp.float32))
    tgt = target.reshape(B, -1).astype(jnp.float32)
    p_p = jnp.minimum(pred + clip_pos, 1.0) * pred
    num_pos = jnp.sum(p_p * tgt, axis=1)
    den_pos = jnp.sum(p_p ** p_pos + tgt ** p_pos, axis=1)
    xs_neg = 1.0 - pred
    p_n = jnp.minimum(xs_neg + clip_neg, 1.0) * xs_neg
    num_neg = jnp.sum(p_n * (1.0 - tgt), axis=1)
    den_neg = jnp.sum(p_n ** p_neg + (1.0 - tgt) ** p_neg, axis=1)
    loss = (1.0 - 2.0 * num_pos / den_pos) * pos_weight + \
           (1.0 - 2.0 * num_neg / den_neg) * (1.0 - pos_weight)
    return jnp.mean(loss)


if __name__ == "__main__":
    key = jax.random.PRNGKey(0)
    k1, k2 = jax.random.split(key)
    B, C, H, W = 2, 4, 16, 16          # N = C*H*W = 1024
    logits = jax.random.normal(k1, (B, C, H, W), dtype=jnp.float32)
    target = (jax.random.uniform(k2, (B, C, H, W)) > 0.5).astype(jnp.float32)

    out = jax.block_until_ready(focal_dice_loss(logits, target))
    ref = jax.block_until_ready(_reference(logits, target))
    assert jnp.allclose(out, ref, atol=1e-5, rtol=1e-5), (out, ref)

    print("KERNEL_OK")
</pallas_src>

<mosaic_0001>
module attributes {stable_mosaic.version = 11 : i64} {
  func.func @_focal_dice_kernel(%arg0: i32, %arg1: i32, %arg2: memref<8x128xf32, #tpu.memory_space<vmem>>, %arg3: memref<8x128xf32, #tpu.memory_space<vmem>>, %arg4: memref<8x1xf32, #tpu.memory_space<vmem>>, %arg5: memref<8x1xf32, #tpu.memory_space<vmem>>, %arg6: memref<8x1xf32, #tpu.memory_space<vmem>>, %arg7: memref<8x1xf32, #tpu.memory_space<vmem>>) attributes {dimension_semantics = [#tpu.dimension_semantics<parallel>, #tpu.dimension_semantics<arbitrary>], iteration_bounds = array<i64: 2, 1>, scalar_prefetch = 0 : i64, scratch_operands = 0 : i64, tpu.core_type = #tpu.core_type<tc>, window_params = [{transform_indices = @transform_0, window_bounds = array<i64: 8, 128>}, {transform_indices = @transform_1, window_bounds = array<i64: 8, 128>}, {transform_indices = @transform_2, window_bounds = array<i64: 8, 1>}, {transform_indices = @transform_3, window_bounds = array<i64: 8, 1>}, {transform_indices = @transform_4, window_bounds = array<i64: 8, 1>}, {transform_indices = @transform_5, window_bounds = array<i64: 8, 1>}]} {
    %c0_i32 = arith.constant 0 : i32
    %0 = arith.cmpi eq, %arg1, %c0_i32 : i32
    %1 = arith.extui %0 : i1 to i32
    %c0_i32_0 = arith.constant 0 : i32
    %2 = arith.cmpi ne, %1, %c0_i32_0 : i32
    scf.if %2 {
      %cst_30 = arith.constant 0.000000e+00 : f32
      %52 = vector.broadcast %cst_30 : f32 to vector<8x1xf32>
      %c0_31 = arith.constant 0 : index
      %c0_32 = arith.constant 0 : index
      %53 = vector.load %arg4[%c0_31, %c0_32] : memref<8x1xf32, #tpu.memory_space<vmem>>, vector<8x1xf32>
      tpu.vector_store %arg4[%c0_31, %c0_32], %52 {strides = array<i32>} : memref<8x1xf32, #tpu.memory_space<vmem>>, vector<8x1xf32>,
      %cst_33 = arith.constant 0.000000e+00 : f32
      %54 = vector.broadcast %cst_33 : f32 to vector<8x1xf32>
      %c0_34 = arith.constant 0 : index
      %c0_35 = arith.constant 0 : index
      %55 = vector.load %arg5[%c0_34, %c0_35] : memref<8x1xf32, #tpu.memory_space<vmem>>, vector<8x1xf32>
      tpu.vector_store %arg5[%c0_34, %c0_35], %54 {strides = array<i32>} : memref<8x1xf32, #tpu.memory_space<vmem>>, vector<8x1xf32>,
      %cst_36 = arith.constant 0.000000e+00 : f32
      %56 = vector.broadcast %cst_36 : f32 to vector<8x1xf32>
      %c0_37 = arith.constant 0 : index
      %c0_38 = arith.constant 0 : index
      %57 = vector.load %arg6[%c0_37, %c0_38] : memref<8x1xf32, #tpu.memory_space<vmem>>, vector<8x1xf32>
      tpu.vector_store %arg6[%c0_37, %c0_38], %56 {strides = array<i32>} : memref<8x1xf32, #tpu.memory_space<vmem>>, vector<8x1xf32>,
      %cst_39 = arith.constant 0.000000e+00 : f32
      %58 = vector.broadcast %cst_39 : f32 to vector<8x1xf32>
      %c0_40 = arith.constant 0 : index
      %c0_41 = arith.constant 0 : index
      %59 = vector.load %arg7[%c0_40, %c0_41] : memref<8x1xf32, #tpu.memory_space<vmem>>, vector<8x1xf32>
      tpu.vector_store %arg7[%c0_40, %c0_41], %58 {strides = array<i32>} : memref<8x1xf32, #tpu.memory_space<vmem>>, vector<8x1xf32>,
    } else {
    }
    %c0 = arith.constant 0 : index
    %c0_1 = arith.constant 0 : index
    %3 = vector.load %arg2[%c0, %c0_1] : memref<8x128xf32, #tpu.memory_space<vmem>>, vector<8x128xf32>
    %c0_2 = arith.constant 0 : index
    %c0_3 = arith.constant 0 : index
    %4 = vector.load %arg3[%c0_2, %c0_3] : memref<8x128xf32, #tpu.memory_space<vmem>>, vector<8x128xf32>
    %5 = arith.negf %3 : vector<8x128xf32>
    %6 = math.exp %5 : vector<8x128xf32>
    %cst = arith.constant 1.000000e+00 : f32
    %7 = vector.broadcast %cst : f32 to vector<8x128xf32>
    %8 = arith.addf %7, %6 : vector<8x128xf32>
    %9 = arith.divf %7, %8 : vector<8x128xf32>
    %cst_4 = arith.constant 0.699999988 : f32
    %10 = vector.broadcast %cst_4 : f32 to vector<8x128xf32>
    %11 = arith.addf %9, %10 : vector<8x128xf32>
    %cst_5 = arith.constant 1.000000e+00 : f32
    %12 = vector.broadcast %cst_5 : f32 to vector<8x128xf32>
    %13 = arith.minimumf %11, %12 : vector<8x128xf32>
    %14 = arith.mulf %13, %9 : vector<8x128xf32>
    %cst_6 = arith.constant 1.000000e+00 : f32
    %15 = vector.broadcast %cst_6 : f32 to vector<8x128xf32>
    %16 = arith.subf %15, %4 : vector<8x128xf32>
    %cst_7 = arith.constant 1.000000e+00 : f32
    %17 = vector.broadcast %cst_7 : f32 to vector<8x128xf32>
    %18 = arith.subf %17, %9 : vector<8x128xf32>
    %cst_8 = arith.constant 5.000000e-01 : f32
    %19 = vector.broadcast %cst_8 : f32 to vector<8x128xf32>
    %20 = arith.addf %18, %19 : vector<8x128xf32>
    %cst_9 = arith.constant 1.000000e+00 : f32
    %21 = vector.broadcast %cst_9 : f32 to vector<8x128xf32>
    %22 = arith.minimumf %20, %21 : vector<8x128xf32>
    %23 = arith.mulf %22, %18 : vector<8x128xf32>
    %24 = arith.mulf %4, %4 : vector<8x128xf32>
    %25 = arith.mulf %16, %16 : vector<8x128xf32>
    %c0_10 = arith.constant 0 : index
    %c0_11 = arith.constant 0 : index
    %26 = vector.load %arg4[%c0_10, %c0_11] : memref<8x1xf32, #tpu.memory_space<vmem>>, vector<8x1xf32>
    %27 = arith.mulf %14, %4 : vector<8x128xf32>
    %cst_12 = arith.constant dense<0.000000e+00> : vector<8xf32>
    %28 = vector.multi_reduction <add>, %27, %cst_12 [1] : vector<8x128xf32> to vector<8xf32>
    %29 = vector.shape_cast %28 : vector<8xf32> to vector<8x1xf32>
    %30 = arith.addf %26, %29 : vector<8x1xf32>
    %c0_13 = arith.constant 0 : index
    %c0_14 = arith.constant 0 : index
    %31 = vector.load %arg4[%c0_13, %c0_14] : memref<8x1xf32, #tpu.memory_space<vmem>>, vector<8x1xf32>
    tpu.vector_store %arg4[%c0_13, %c0_14], %30 {strides = array<i32>} : memref<8x1xf32, #tpu.memory_space<vmem>>, vector<8x1xf32>,
    %c0_15 = arith.constant 0 : index
    %c0_16 = arith.constant 0 : index
    %32 = vector.load %arg5[%c0_15, %c0_16] : memref<8x1xf32, #tpu.memory_space<vmem>>, vector<8x1xf32>
    %33 = arith.mulf %14, %14 : vector<8x128xf32>
    %34 = arith.addf %33, %24 : vector<8x128xf32>
    %cst_17 = arith.constant dense<0.000000e+00> : vector<8xf32>
    %35 = vector.multi_reduction <add>, %34, %cst_17 [1] : vector<8x128xf32> to vector<8xf32>
    %36 = vector.shape_cast %35 : vector<8xf32> to vector<8x1xf32>
    %37 = arith.addf %32, %36 : vector<8x1xf32>
    %c0_18 = arith.constant 0 : index
    %c0_19 = arith.constant 0 : index
    %38 = vector.load %arg5[%c0_18, %c0_19] : memref<8x1xf32, #tpu.memory_space<vmem>>, vector<8x1xf32>
    tpu.vector_store %arg5[%c0_18, %c0_19], %37 {strides = array<i32>} : memref<8x1xf32, #tpu.memory_space<vmem>>, vector<8x1xf32>,
    %c0_20 = arith.constant 0 : index
    %c0_21 = arith.constant 0 : index
    %39 = vector.load %arg6[%c0_20, %c0_21] : memref<8x1xf32, #tpu.memory_space<vmem>>, vector<8x1xf32>
    %40 = arith.mulf %23, %16 : vector<8x128xf32>
    %cst_22 = arith.constant dense<0.000000e+00> : vector<8xf32>
    %41 = vector.multi_reduction <add>, %40, %cst_22 [1] : vector<8x128xf32> to vector<8xf32>
    %42 = vector.shape_cast %41 : vector<8xf32> to vector<8x1xf32>
    %43 = arith.addf %39, %42 : vector<8x1xf32>
    %c0_23 = arith.constant 0 : index
    %c0_24 = arith.constant 0 : index
    %44 = vector.load %arg6[%c0_23, %c0_24] : memref<8x1xf32, #tpu.memory_space<vmem>>, vector<8x1xf32>
    tpu.vector_store %arg6[%c0_23, %c0_24], %43 {strides = array<i32>} : memref<8x1xf32, #tpu.memory_space<vmem>>, vector<8x1xf32>,
    %c0_25 = arith.constant 0 : index
    %c0_26 = arith.constant 0 : index
    %45 = vector.load %arg7[%c0_25, %c0_26] : memref<8x1xf32, #tpu.memory_space<vmem>>, vector<8x1xf32>
    %46 = arith.mulf %23, %23 : vector<8x128xf32>
    %47 = arith.addf %46, %25 : vector<8x128xf32>
    %cst_27 = arith.constant dense<0.000000e+00> : vector<8xf32>
    %48 = vector.multi_reduction <add>, %47, %cst_27 [1] : vector<8x128xf32> to vector<8xf32>
    %49 = vector.shape_cast %48 : vector<8xf32> to vector<8x1xf32>
    %50 = arith.addf %45, %49 : vector<8x1xf32>
    %c0_28 = arith.constant 0 : index
    %c0_29 = arith.constant 0 : index
    %51 = vector.load %arg7[%c0_28, %c0_29] : memref<8x1xf32, #tpu.memory_space<vmem>>, vector<8x1xf32>
    tpu.vector_store %arg7[%c0_28, %c0_29], %50 {strides = array<i32>} : memref<8x1xf32, #tpu.memory_space<vmem>>, vector<8x1xf32>,
    return
  }
  func.func @transform_0(%arg0: i32, %arg1: i32) -> (i32, i32) {
    %c0_i32 = arith.constant 0 : i32
    return %arg0, %arg1 : i32, i32
  }
  func.func @transform_1(%arg0: i32, %arg1: i32) -> (i32, i32) {
    %c0_i32 = arith.constant 0 : i32
    return %arg0, %arg1 : i32, i32
  }
  func.func @transform_2(%arg0: i32, %arg1: i32) -> (i32, i32) {
    %c0_i32 = arith.constant 0 : i32
    %c0_i32_0 = arith.constant 0 : i32
    return %arg0, %c0_i32 : i32, i32
  }
  func.func @transform_3(%arg0: i32, %arg1: i32) -> (i32, i32) {
    %c0_i32 = arith.constant 0 : i32
    %c0_i32_0 = arith.constant 0 : i32
    return %arg0, %c0_i32 : i32, i32
  }
  func.func @transform_4(%arg0: i32, %arg1: i32) -> (i32, i32) {
    %c0_i32 = arith.constant 0 : i32
    %c0_i32_0 = arith.constant 0 : i32
    return %arg0, %c0_i32 : i32, i32
  }
  func.func @transform_5(%arg0: i32, %arg1: i32) -> (i32, i32) {
    %c0_i32 = arith.constant 0 : i32
    %c0_i32_0 = arith.constant 0 : i32
    return %arg0, %c0_i32 : i32, i32
  }
}

</mosaic_0001>

<llo_original>
// kernel: tpu_custom_call.1
$region0: #{tpu_custom_call.1}
  #allocation0 [shape = 'u32[]', space=smem, size = 0x4, offset = 0x4, fixed_abs, tag = 'smem constant byte address 0x4 - core index']
  #allocation1 [shape = 'u32[144,128]{1,0:T(1,128)}', space=vmem, size = 0x12000, scoped, tag = 'internal scratch']
  %s0 = inlined_call_operand.hbm [shape: f32[16,128], index: 0, kind: input, shape index: {}]
  %s1 = inlined_call_operand.hbm [shape: f32[16,128], index: 1, kind: input, shape index: {}]
  %s2 = inlined_call_operand.vmem [shape: f32[16,1], index: 2, kind: output, shape index: {0}]
  %s3 = inlined_call_operand.vmem [shape: f32[16,1], index: 3, kind: output, shape index: {1}]
  %s4 = inlined_call_operand.vmem [shape: f32[16,1], index: 4, kind: output, shape index: {2}]
  %s5 = inlined_call_operand.vmem [shape: f32[16,1], index: 5, kind: output, shape index: {3}]
  %6 = xla_tuple %s2, %s3, %s4, %s5
  %s7 = sld [smem:[#allocation0]]
  $region77: #{tpu_custom_call.1} parent=0
    _
  %s9 = ssub.s32 1, %s7
  %s10 = scalar_select 0, %s9, %s7
  $region1: #{tpu_custom_call.1} parent=0
    #allocation2 [shape = 'u8[8192]{0}', space=vmem, size = 0x2000, scoped, tag = 'input window, operand 0']
    #allocation3 [shape = 's32[2]{0}', space=sflag, size = 0x8, scoped, tag = 'scoped memory for tpu_custom_call.1']
    #allocation4 [shape = 'u8[8192]{0}', space=vmem, size = 0x2000, scoped, tag = 'input window, operand 1']
    #allocation5 [shape = 's32[2]{0}', space=sflag, size = 0x8, scoped, tag = 'scoped memory for tpu_custom_call.1']
    %11 = vsyncpa [#allocation3], 0
    %s12 = scalar_lea.sflag [#allocation3], 1
    %13 = vsyncpa %s12, 0
    %14 = vsyncpa [#allocation5], 0
    %s15 = scalar_lea.sflag [#allocation5], 1
    %16 = vsyncpa %s15, 0
    loop: start=0, step=1, limit=4
    $region2: #{tpu_custom_call.1} parent=1 // loop_pre_header
      _
    $region3: #{tpu_custom_call.1} parent=1 // loop_header
      %s18 = sphi 0, %s22
      %p19 = scmp.ge.s32.totalorder %s18, 4
      %s25 = sphi 0, %s37
      %s26 = sphi 0, %s33
      %s27 = sphi 0, %s25
      %s28 = sphi 0, %s26
      %s29 = sphi 0, %s27
      %s30 = sphi 0, %s28
      %s42 = sphi 0, %s44
      %s45 = sphi 0, %s42
      %s46 = sphi 0, %s45
      %s62 = sphi 0, %s46
      %s70 = sphi 0, %s72
      %s73 = sphi 0, %s70
      %s74 = sphi 0, %s73
      %s90 = sphi 0, %s74
      %s96 = sphi 0, %s98
      %s99 = sphi 0, %s96
      %s100 = sphi 0, %s99
      %s116 = sphi 0, %s100
      %s122 = sphi 0, %s124
      %s125 = sphi 0, %s122
      %s126 = sphi 0, %s125
      %s142 = sphi 0, %s126
      %s148 = sphi 0, %s150
      %s151 = sphi 0, %s148
      %s152 = sphi 0, %s151
      %s168 = sphi 0, %s152
      %s174 = sphi 0, %s176
      %s177 = sphi 0, %s174
      %s178 = sphi 0, %s177
      %s194 = sphi 0, %s178
    $region4: #{tpu_custom_call.1} parent=1 // loop_header_branch
      %21 = sbr.rel (%p19) target = $region8
    $region5: #{tpu_custom_call.1} parent=1 // loop_body
      %s23 = ssub.s32 %s18, 1
      %s24 = ssub.s32 %s18, 2
      %s31 = sadd.s32 1, %s26
      %p32 = scmp.ge.s32.totalorder %s31, 1
      %s33 = scalar_select %p32, 0, %s31
      %s34 = sadd.s32 1, %s25
      %s35 = scalar_select %p32, %s34, %s25
      %p36 = scmp.ge.s32.totalorder %s35, 2
      %s37 = scalar_select %p36, 0, %s35
      %s38 = ssub.s32 %s25, %s37
      %s39 = ssub.s32 %s26, %s33
      %s40 = sor.u32 %s38, %s39
      %p41 = scmp.eq.s32.totalorder %s40, 0
      %s43 = sadd.s32 %s42, 1
      %s44 = scalar_select %p41, %s42, %s43
      %p47 = pneg %p41
      %p48 = scmp.eq.s32.totalorder %s18, 1
      %p49 = por %p47, %p48
      %p50 = scmp.ne.s32.totalorder %s42, %s45
      %p51 = scmp.eq.s32.totalorder %s18, 0
      %p52 = por %p50, %p51
      %p53 = scmp.ne.s32.totalorder %s42, %s45
      %p54 = scmp.eq.s32.totalorder %s23, 1
      %p55 = por %p53, %p54
      %p56 = scmp.ne.s32.totalorder %s45, %s46
      %p57 = scmp.eq.s32.totalorder %s23, 0
      %p58 = por %p56, %p57
      %p59 = scmp.ne.s32.totalorder %s45, %s46
      %p60 = scmp.eq.s32.totalorder %s24, 1
      %p61 = por %p59, %p60
      %p63 = scmp.ne.s32.totalorder %s46, %s62
      %p64 = scmp.eq.s32.totalorder %s24, 0
      %p65 = por %p63, %p64
      %s66 = ssub.s32 %s25, %s37
      %s67 = ssub.s32 %s26, %s33
      %s68 = sor.u32 %s66, %s67
      %p69 = scmp.eq.s32.totalorder %s68, 0
      %s71 = sadd.s32 %s70, 1
      %s72 = scalar_select %p69, %s70, %s71
      %p75 = pneg %p69
      %p76 = scmp.eq.s32.totalorder %s18, 1
      %p77 = por %p75, %p76
      %p78 = scmp.ne.s32.totalorder %s70, %s73
      %p79 = scmp.eq.s32.totalorder %s18, 0
      %p80 = por %p78, %p79
      %p81 = scmp.ne.s32.totalorder %s70, %s73
      %p82 = scmp.eq.s32.totalorder %s23, 1
      %p83 = por %p81, %p82
      %p84 = scmp.ne.s32.totalorder %s73, %s74
      %p85 = scmp.eq.s32.totalorder %s23, 0
      %p86 = por %p84, %p85
      %p87 = scmp.ne.s32.totalorder %s73, %s74
      %p88 = scmp.eq.s32.totalorder %s24, 1
      %p89 = por %p87, %p88
      %p91 = scmp.ne.s32.totalorder %s74, %s90
      %p92 = scmp.eq.s32.totalorder %s24, 0
      %p93 = por %p91, %p92
      %s94 = ssub.s32 %s25, %s37
      %p95 = scmp.eq.s32.totalorder %s94, 0
      %s97 = sadd.s32 %s96, 1
      %s98 = scalar_select %p95, %s96, %s97
      %p101 = pneg %p95
      %p102 = scmp.eq.s32.totalorder %s18, 1
      %p103 = por %p101, %p102
      %p104 = scmp.ne.s32.totalorder %s96, %s99
      %p105 = scmp.eq.s32.totalorder %s18, 0
      %p106 = por %p104, %p105
      %p107 = scmp.ne.s32.totalorder %s96, %s99
      %p108 = scmp.eq.s32.totalorder %s23, 1
      %p109 = por %p107, %p108
      %p110 = scmp.ne.s32.totalorder %s99, %s100
      %p111 = scmp.eq.s32.totalorder %s23, 0
      %p112 = por %p110, %p111
      %p113 = scmp.ne.s32.totalorder %s99, %s100
      %p114 = scmp.eq.s32.totalorder %s24, 1
      %p115 = por %p113, %p114
      %p117 = scmp.ne.s32.totalorder %s100, %s116
      %p118 = scmp.eq.s32.totalorder %s24, 0
      %p119 = por %p117, %p118
      %s120 = ssub.s32 %s25, %s37
      %p121 = scmp.eq.s32.totalorder %s120, 0
      %s123 = sadd.s32 %s122, 1
      %s124 = scalar_select %p121, %s122, %s123
      %p127 = pneg %p121
      %p128 = scmp.eq.s32.totalorder %s18, 1
      %p129 = por %p127, %p128
      %p130 = scmp.ne.s32.totalorder %s122, %s125
      %p131 = scmp.eq.s32.totalorder %s18, 0
      %p132 = por %p130, %p131
      %p133 = scmp.ne.s32.totalorder %s122, %s125
      %p134 = scmp.eq.s32.totalorder %s23, 1
      %p135 = por %p133, %p134
      %p136 = scmp.ne.s32.totalorder %s125, %s126
      %p137 = scmp.eq.s32.totalorder %s23, 0
      %p138 = por %p136, %p137
      %p139 = scmp.ne.s32.totalorder %s125, %s126
      %p140 = scmp.eq.s32.totalorder %s24, 1
      %p141 = por %p139, %p140
      %p143 = scmp.ne.s32.totalorder %s126, %s142
      %p144 = scmp.eq.s32.totalorder %s24, 0
      %p145 = por %p143, %p144
      %s146 = ssub.s32 %s25, %s37
      %p147 = scmp.eq.s32.totalorder %s146, 0
      %s149 = sadd.s32 %s148, 1
      %s150 = scalar_select %p147, %s148, %s149
      %p153 = pneg %p147
      %p154 = scmp.eq.s32.totalorder %s18, 1
      %p155 = por %p153, %p154
      %p156 = scmp.ne.s32.totalorder %s148, %s151
      %p157 = scmp.eq.s32.totalorder %s18, 0
      %p158 = por %p156, %p157
      %p159 = scmp.ne.s32.totalorder %s148, %s151
      %p160 = scmp.eq.s32.totalorder %s23, 1
      %p161 = por %p159, %p160
      %p162 = scmp.ne.s32.totalorder %s151, %s152
      %p163 = scmp.eq.s32.totalorder %s23, 0
      %p164 = por %p162, %p163
      %p165 = scmp.ne.s32.totalorder %s151, %s152
      %p166 = scmp.eq.s32.totalorder %s24, 1
      %p167 = por %p165, %p166
      %p169 = scmp.ne.s32.totalorder %s152, %s168
      %p170 = scmp.eq.s32.totalorder %s24, 0
      %p171 = por %p169, %p170
      %s172 = ssub.s32 %s25, %s37
      %p173 = scmp.eq.s32.totalorder %s172, 0
      %s175 = sadd.s32 %s174, 1
      %s176 = scalar_select %p173, %s174, %s175
      %p179 = pneg %p173
      %p180 = scmp.eq.s32.totalorder %s18, 1
      %p181 = por %p179, %p180
      %p182 = scmp.ne.s32.totalorder %s174, %s177
      %p183 = scmp.eq.s32.totalorder %s18, 0
      %p184 = por %p182, %p183
      %p185 = scmp.ne.s32.totalorder %s174, %s177
      %p186 = scmp.eq.s32.totalorder %s23, 1
      %p187 = por %p185, %p186
      %p188 = scmp.ne.s32.totalorder %s177, %s178
      %p189 = scmp.eq.s32.totalorder %s23, 0
      %p190 = por %p188, %p189
      %p191 = scmp.ne.s32.totalorder %s177, %s178
      %p192 = scmp.eq.s32.totalorder %s24, 1
      %p193 = por %p191, %p192
      %p195 = scmp.ne.s32.totalorder %s178, %s194
      %p196 = scmp.eq.s32.totalorder %s24, 0
      %p197 = por %p195, %p196
      %p198 = scmp.le.s32.totalorder 1, %s18
      %p199 = scmp.lt.s32.totalorder %s18, 3
      %p200 = pnand %p198, %p199
      %p201 = pneg %p200
      // Predicated region
      $region9: #{tpu_custom_call.1} parent=5 // pred_check
        _
      $region10: #{tpu_custom_call.1} parent=5 // pred_check_branch
        %203 = sbr.rel (%p200) target = $region12
      $region11: #{tpu_custom_call.1} parent=5 // pred_region
        %s204 = ssub.s32 %s18, 1
      $region12: #{tpu_custom_call.1} parent=5 // pred_fallthru
        _
      %p205 = scmp.lt.s32.totalorder %s18, 2
      // Predicated region
      $region13: #{tpu_custom_call.1} parent=5 // pred_check
        %p206 = pneg %p205
      $region14: #{tpu_custom_call.1} parent=5 // pred_check_branch
        %208 = sbr.rel (%p206) target = $region16
      $region15: #{tpu_custom_call.1} parent=5 // pred_region
        // Predicated region
        $region17: #{tpu_custom_call.1} parent=15 // pred_check
          %p209 = pneg %p52
        $region18: #{tpu_custom_call.1} parent=15 // pred_check_branch
          %211 = sbr.rel (%p209) target = $region20
        $region19: #{tpu_custom_call.1} parent=15 // pred_region
          %s212 = sand.u32 %s42, 1
          %s213 = scalar_lea.sflag [#allocation3], %s212
          %s214 = sand.u32 %s42, 1
          %s215 = smul.addr %s214, 8
          %s216 = scalar_lea.vmem [#allocation2], %s215
          %s218 = ssub.s32 128, 128
          %219 = vsyncadd %s213, %s218
          %s220 = sadd.s32 %s26, %s25
          %s221 = smul.addr %s220, 128
          %s222 = scalar_lea.hbm %s0, %s221
          %s224 = sshll.u32 %s216, 4
          %s225 = int_to_ptr.vmem [resolvable:$true] %s224
          %227 = dma.hbm_to_vmem [thread:$0]  %s222, 128, %s225, %s213
        $region20: #{tpu_custom_call.1} parent=15 // pred_fallthru
          _
        // Predicated region
        $region21: #{tpu_custom_call.1} parent=15 // pred_check
          %p228 = pneg %p80
        $region22: #{tpu_custom_call.1} parent=15 // pred_check_branch
          %230 = sbr.rel (%p228) target = $region24
        $region23: #{tpu_custom_call.1} parent=15 // pred_region
          %s231 = sand.u32 %s70, 1
          %s232 = scalar_lea.sflag [#allocation5], %s231
          %s233 = sand.u32 %s70, 1
          %s234 = smul.addr %s233, 8
          %s235 = scalar_lea.vmem [#allocation4], %s234
          %s237 = ssub.s32 128, 128
          %238 = vsyncadd %s232, %s237
          %s239 = sadd.s32 %s26, %s25
          %s240 = smul.addr %s239, 128
          %s241 = scalar_lea.hbm %s1, %s240
          %s243 = sshll.u32 %s235, 4
          %s244 = int_to_ptr.vmem [resolvable:$true] %s243
          %246 = dma.hbm_to_vmem [thread:$0]  %s241, 128, %s244, %s232
        $region24: #{tpu_custom_call.1} parent=15 // pred_fallthru
          _
      $region16: #{tpu_custom_call.1} parent=5 // pred_fallthru
        _
      %p247 = scmp.le.s32.totalorder 1, %s18
      %p248 = scmp.lt.s32.totalorder %s18, 3
      %p249 = pnand %p247, %p248
      %p250 = pneg %p249
      // Predicated region
      $region25: #{tpu_custom_call.1} parent=5 // pred_check
        _
      $region26: #{tpu_custom_call.1} parent=5 // pred_check_branch
        %252 = sbr.rel (%p249) target = $region28
      $region27: #{tpu_custom_call.1} parent=5 // pred_region
        %s253 = ssub.s32 %s18, 1
        %s254 = sand.u32 %s45, 1
        %s255 = scalar_lea.sflag [#allocation3], %s254
        %s256 = sand.u32 %s45, 1
        %s257 = smul.addr %s256, 8
        %s258 = scalar_lea.vmem [#allocation2], %s257
        // Predicated region
        $region29: #{tpu_custom_call.1} parent=27 // pred_check
          %p259 = pneg %p58
        $region30: #{tpu_custom_call.1} parent=27 // pred_check_branch
          %261 = sbr.rel (%p259) target = $region32
        $region31: #{tpu_custom_call.1} parent=27 // pred_region
          %262 = dma.done %s255, 128
        $region32: #{tpu_custom_call.1} parent=27 // pred_fallthru
          _
        %s263 = sand.u32 %s73, 1
        %s264 = scalar_lea.sflag [#allocation5], %s263
        %s265 = sand.u32 %s73, 1
        %s266 = smul.addr %s265, 8
        %s267 = scalar_lea.vmem [#allocation4], %s266
        // Predicated region
        $region33: #{tpu_custom_call.1} parent=27 // pred_check
          %p268 = pneg %p86
        $region34: #{tpu_custom_call.1} parent=27 // pred_check_branch
          %270 = sbr.rel (%p268) target = $region36
        $region35: #{tpu_custom_call.1} parent=27 // pred_region
          %271 = dma.done %s264, 128
        $region36: #{tpu_custom_call.1} parent=27 // pred_fallthru
          _
        %s272 = sand.u32 %s45, 1
        %s273 = scalar_lea.sflag [#allocation3], %s272
        %s274 = sand.u32 %s45, 1
        %s275 = smul.addr %s274, 8
        %s276 = scalar_lea.vmem [#allocation2], %s275
        %p277 = pneg %p58
        %p278 = pneg %p55
        %s279 = sand.u32 %s73, 1
        %s280 = scalar_lea.sflag [#allocation5], %s279
        %s281 = sand.u32 %s73, 1
        %s282 = smul.addr %s281, 8
        %s283 = scalar_lea.vmem [#allocation4], %s282
        %p284 = pneg %p86
        %p285 = pneg %p83
        %p286 = pneg %p112
        %p287 = pneg %p109
        %p288 = scmp.lt.s32.totalorder %s27, 1
        %s289 = scalar_select %p288, %s27, 1
        %s290 = smul.addr %s289, 8
        %s291 = scalar_lea.vmem %s2, %s290
        %p292 = pneg %p138
        %p293 = pneg %p135
        %p294 = scmp.lt.s32.totalorder %s27, 1
        %s295 = scalar_select %p294, %s27, 1
        %s296 = smul.addr %s295, 8
        %s297 = scalar_lea.vmem %s3, %s296
        %p298 = pneg %p164
        %p299 = pneg %p161
        %p300 = scmp.lt.s32.totalorder %s27, 1
        %s301 = scalar_select %p300, %s27, 1
        %s302 = smul.addr %s301, 8
        %s303 = scalar_lea.vmem %s4, %s302
        %p304 = pneg %p190
        %p305 = pneg %p187
        %p306 = scmp.lt.s32.totalorder %s27, 1
        %s307 = scalar_select %p306, %s27, 1
        %s308 = smul.addr %s307, 8
        %s309 = scalar_lea.vmem %s5, %s308
        %p310 = scmp.lt.s32.totalorder %s27, 1
        %s311 = scalar_select %p310, %s27, 1
        %s312 = smul.addr %s311, 8
        %s313 = scalar_lea.vmem %s2, %s312
        %p314 = scmp.lt.s32.totalorder %s27, 1
        %s315 = scalar_select %p314, %s27, 1
        %s316 = smul.addr %s315, 8
        %s317 = scalar_lea.vmem %s3, %s316
        %p318 = scmp.lt.s32.totalorder %s27, 1
        %s319 = scalar_select %p318, %s27, 1
        %s320 = smul.addr %s319, 8
        %s321 = scalar_lea.vmem %s4, %s320
        %p322 = scmp.lt.s32.totalorder %s27, 1
        %s323 = scalar_select %p322, %s27, 1
        %s324 = smul.addr %s323, 8
        %s325 = scalar_lea.vmem %s5, %s324
        %p326 = scmp.eq.s32.totalorder %s28, 0
        // Predicated region
        $region37: #{tpu_custom_call.1} parent=27 // pred_check
          %p327 = pneg %p326
        $region38: #{tpu_custom_call.1} parent=27 // pred_check_branch
          %329 = sbr.rel (%p327) target = $region40
        $region39: #{tpu_custom_call.1} parent=27 // pred_region
          %vm330 = vcmask 7168
          %331 = vst.msk [vmem:[%s313] sm:$0xff] %vm330, 0.0
          %332 = vst.msk [vmem:[%s317] sm:$0xff] %vm330, 0.0
          %333 = vst.msk [vmem:[%s321] sm:$0xff] %vm330, 0.0
          %334 = vst.msk [vmem:[%s325] sm:$0xff] %vm330, 0.0
        $region40: #{tpu_custom_call.1} parent=27 // pred_fallthru
          _
        %v335 = vld [vmem:[%s258] sm:$0xff]
        %v336 = vld [vmem:[%s267] sm:$0xff]
        %v337 = vxor.u32 %v335, 2147483648
        %v338 = vmul.f32 %v337, 1.442695
        %v339 = vpow.pop %v338
        %v340 = vadd.f32 %v339, 1.0
        %v341 = vrcp.pop %v340
        %v342 = vmul.f32 1.0, %v341
        %v343 = vadd.f32 %v342, 0.7
        %v344 = vmin.f32 %v343, 1.0
        %v345 = vmul.f32 %v344, %v342
        %v346 = vsub.f32 1.0, %v336
        %v347 = vsub.f32 1.0, %v342
        %v348 = vadd.f32 %v347, 0.5
        %v349 = vmin.f32 %v348, 1.0
        %v350 = vmul.f32 %v349, %v347
        %v351 = vmul.f32 %v336, %v336
        %v352 = vmul.f32 %v346, %v346
        %v353 = vld [vmem:[%s313] sm:$0xff]
        %v354 = vmul.f32 %v345, %v336
        %355 = vadd.xlane.f32.xlu0 %v354
        %v356 = vpop.xlane.xlu0 %355
        %v357 = vadd.f32 %v353, %v356
        %vm358 = vcmask 7168
        %359 = vst.msk [vmem:[%s313] sm:$0xff] %vm358, %v357
        %v360 = vld [vmem:[%s317] sm:$0xff]
        %v361 = vmul.f32 %v345, %v345
        %v362 = vadd.f32 %v361, %v351
        %363 = vadd.xlane.f32.xlu0 %v362
        %v364 = vpop.xlane.xlu0 %363
        %v365 = vadd.f32 %v360, %v364
        %366 = vst.msk [vmem:[%s317] sm:$0xff] %vm358, %v365
        %v367 = vld [vmem:[%s321] sm:$0xff]
        %v368 = vmul.f32 %v350, %v346
        %369 = vadd.xlane.f32.xlu0 %v368
        %v370 = vpop.xlane.xlu0 %369
        %v371 = vadd.f32 %v367, %v370
        %372 = vst.msk [vmem:[%s321] sm:$0xff] %vm358, %v371
        %v373 = vld [vmem:[%s325] sm:$0xff]
        %v374 = vmul.f32 %v350, %v350
        %v375 = vadd.f32 %v374, %v352
        %376 = vadd.xlane.f32.xlu0 %v375
        %v377 = vpop.xlane.xlu0 %376
        %v378 = vadd.f32 %v373, %v377
        %379 = vst.msk [vmem:[%s325] sm:$0xff] %vm358, %v378
        %p380 = scmp.lt.s32.totalorder %s27, 1
        %s381 = scalar_select %p380, %s27, 1
        %s382 = smul.addr %s381, 8
        %s383 = scalar_lea.vmem %s2, %s382
        %p384 = scmp.lt.s32.totalorder %s27, 1
        %s385 = scalar_select %p384, %s27, 1
        %s386 = smul.addr %s385, 8
        %s387 = scalar_lea.vmem %s3, %s386
        %p388 = scmp.lt.s32.totalorder %s27, 1
        %s389 = scalar_select %p388, %s27, 1
        %s390 = smul.addr %s389, 8
        %s391 = scalar_lea.vmem %s4, %s390
        %p392 = scmp.lt.s32.totalorder %s27, 1
        %s393 = scalar_select %p392, %s27, 1
        %s394 = smul.addr %s393, 8
        %s395 = scalar_lea.vmem %s5, %s394
        // Predicated region
        $region41: #{tpu_custom_call.1} parent=27 // pred_check
          %p396 = pneg %p109
        $region42: #{tpu_custom_call.1} parent=27 // pred_check_branch
          %398 = sbr.rel (%p396) target = $region44
        $region43: #{tpu_custom_call.1} parent=27 // pred_region
          _
        $region44: #{tpu_custom_call.1} parent=27 // pred_fallthru
          _
        // Predicated region
        $region45: #{tpu_custom_call.1} parent=27 // pred_check
          %p399 = pneg %p135
        $region46: #{tpu_custom_call.1} parent=27 // pred_check_branch
          %401 = sbr.rel (%p399) target = $region48
        $region47: #{tpu_custom_call.1} parent=27 // pred_region
          _
        $region48: #{tpu_custom_call.1} parent=27 // pred_fallthru
          _
        // Predicated region
        $region49: #{tpu_custom_call.1} parent=27 // pred_check
          %p402 = pneg %p161
        $region50: #{tpu_custom_call.1} parent=27 // pred_check_branch
          %404 = sbr.rel (%p402) target = $region52
        $region51: #{tpu_custom_call.1} parent=27 // pred_region
          _
        $region52: #{tpu_custom_call.1} parent=27 // pred_fallthru
          _
        // Predicated region
        $region53: #{tpu_custom_call.1} parent=27 // pred_check
          %p405 = pneg %p187
        $region54: #{tpu_custom_call.1} parent=27 // pred_check_branch
          %407 = sbr.rel (%p405) target = $region56
        $region55: #{tpu_custom_call.1} parent=27 // pred_region
          _
        $region56: #{tpu_custom_call.1} parent=27 // pred_fallthru
          _
      $region28: #{tpu_custom_call.1} parent=5 // pred_fallthru
        _
      %p408 = scmp.le.s32.totalorder 2, %s18
      // Predicated region
      $region57: #{tpu_custom_call.1} parent=5 // pred_check
        %p409 = pneg %p408
      $region58: #{tpu_custom_call.1} parent=5 // pred_check_branch
        %411 = sbr.rel (%p409) target = $region60
      $region59: #{tpu_custom_call.1} parent=5 // pred_region
        %s412 = ssub.s32 %s18, 2
        // Predicated region
        $region61: #{tpu_custom_call.1} parent=59 // pred_check
          %p413 = pneg %p115
        $region62: #{tpu_custom_call.1} parent=59 // pred_check_branch
          %415 = sbr.rel (%p413) target = $region64
        $region63: #{tpu_custom_call.1} parent=59 // pred_region
          %p416 = scmp.lt.s32.totalorder %s29, 1
          %s417 = scalar_select %p416, %s29, 1
          %s418 = smul.addr %s417, 8
          %s419 = scalar_lea.vmem %s2, %s418
        $region64: #{tpu_custom_call.1} parent=59 // pred_fallthru
          _
        // Predicated region
        $region65: #{tpu_custom_call.1} parent=59 // pred_check
          %p420 = pneg %p141
        $region66: #{tpu_custom_call.1} parent=59 // pred_check_branch
          %422 = sbr.rel (%p420) target = $region68
        $region67: #{tpu_custom_call.1} parent=59 // pred_region
          %p423 = scmp.lt.s32.totalorder %s29, 1
          %s424 = scalar_select %p423, %s29, 1
          %s425 = smul.addr %s424, 8
          %s426 = scalar_lea.vmem %s3, %s425
        $region68: #{tpu_custom_call.1} parent=59 // pred_fallthru
          _
        // Predicated region
        $region69: #{tpu_custom_call.1} parent=59 // pred_check
          %p427 = pneg %p167
        $region70: #{tpu_custom_call.1} parent=59 // pred_check_branch
          %429 = sbr.rel (%p427) target = $region72
        $region71: #{tpu_custom_call.1} parent=59 // pred_region
          %p430 = scmp.lt.s32.totalorder %s29, 1
          %s431 = scalar_select %p430, %s29, 1
          %s432 = smul.addr %s431, 8
          %s433 = scalar_lea.vmem %s4, %s432
        $region72: #{tpu_custom_call.1} parent=59 // pred_fallthru
          _
        // Predicated region
        $region73: #{tpu_custom_call.1} parent=59 // pred_check
          %p434 = pneg %p193
        $region74: #{tpu_custom_call.1} parent=59 // pred_check_branch
          %436 = sbr.rel (%p434) target = $region76
        $region75: #{tpu_custom_call.1} parent=59 // pred_region
          %p437 = scmp.lt.s32.totalorder %s29, 1
          %s438 = scalar_select %p437, %s29, 1
          %s439 = smul.addr %s438, 8
          %s440 = scalar_lea.vmem %s5, %s439
        $region76: #{tpu_custom_call.1} parent=59 // pred_fallthru
          _
      $region60: #{tpu_custom_call.1} parent=5 // pred_fallthru
        _
    $region6: #{tpu_custom_call.1} parent=1 // loop_footer
      %s22 = sadd.s32 1, %s18
    $region7: #{tpu_custom_call.1} parent=1 // loop_footer_branch
      %17 = sbr.rel target = $region3
    $region8: #{tpu_custom_call.1} parent=1 // loop_exit
      _
    %441 = vsyncpa [#allocation3], 1
    %s442 = scalar_lea.sflag [#allocation3], 1
    %443 = vsyncpa %s442, 1
    %444 = vsyncpa [#allocation5], 1
    %s445 = scalar_lea.sflag [#allocation5], 1
    %446 = vsyncpa %s445, 1

</llo_original>
